<compile_context>
chip_gen: v7x
topology: tpu7x:2x2x1
jax: 0.10.0
libtpu: 0.0.40
codegen_flags: <defaults>
</compile_context>

<pallas_src>
import functools

import jax
import jax.numpy as jnp
import numpy as np
from jax.experimental import pallas as pl
from jax.experimental.pallas import tpu as pltpu

NOISE_DIM = 64
EMBEDDING_DIM = 32
BN_EPS = 1e-5
LEAKY_SLOPE = 0.2
MAX_TILE_B = 1024  # rows; a 1024-row tile is only a few MB of VMEM


# ----------------------------------------------------------------------------
# Kernel
# ----------------------------------------------------------------------------
def generator_kernel(
    z_ref,
    w1_ref, b1_ref,
    w2_ref, b2_ref,
    w3_ref, b3_ref,
    w4_ref, b4_ref,
    out_ref,
):
    """BN already folded into the Linears; body = 4 matmuls + LeakyReLU + Tanh."""

    def dense(x, w_ref, b_ref):
        w = w_ref[...]
        # Cast the activation to the (low-precision) weight dtype right before
        # the MXU op; accumulate in f32; bias add / activations stay in f32
        # (safe on v5e, which has no bf16 VPU/EUP).
        return jnp.dot(x.astype(w.dtype), w,
                       preferred_element_type=jnp.float32) + b_ref[...]

    def leaky(h):
        return jnp.where(h > 0, h, LEAKY_SLOPE * h)

    h = leaky(dense(z_ref[...], w1_ref, b1_ref))
    h = leaky(dense(h, w2_ref, b2_ref))
    h = leaky(dense(h, w3_ref, b3_ref))
    out_ref[...] = jnp.tanh(dense(h, w4_ref, b4_ref)).astype(out_ref.dtype)


# ----------------------------------------------------------------------------
# One-time parameter preparation (hoisted out of the per-call hot path)
# ----------------------------------------------------------------------------
def _fold_bn(w, b, gamma, beta, mean, var):
    """Fold eval-mode BatchNorm1d into the preceding Linear (x@W + b)."""
    scale = gamma * jax.lax.rsqrt(var + BN_EPS)          # (1, C)
    return w * scale, (b - mean) * scale + beta


def prepare_params(params, weight_dtype=jnp.bfloat16):
    """Fold BN and cast weights ONCE; reuse the result across all forward calls.

    # TODO(synk): fp8(e4m3) weights on v7x would halve weight DMA further but
    # need a dedicated accuracy check; not enabled here.
    """
    (w1, b1, g1, be1, m1, v1,
     w2, b2, g2, be2, m2, v2,
     w3, b3, g3, be3, m3, v3,
     w4, b4) = params

    fw1, fb1 = _fold_bn(w1, b1, g1, be1, m1, v1)
    fw2, fb2 = _fold_bn(w2, b2, g2, be2, m2, v2)
    fw3, fb3 = _fold_bn(w3, b3, g3, be3, m3, v3)

    weights = tuple(w.astype(weight_dtype) for w in (fw1, fw2, fw3, w4))
    biases = tuple(b.astype(jnp.float32) for b in (fb1, fb2, fb3, b4))
    return weights, biases


# ----------------------------------------------------------------------------
# Generation-aware tiling
# ----------------------------------------------------------------------------
@functools.lru_cache(maxsize=1)
def _num_tensorcores():
    """2 TensorCores per chip on v7x; 1 on v5e/v6e (best-effort detection)."""
    try:
        kind = jax.devices()[0].device_kind.lower()
    except Exception:  # pragma: no cover
        return 1
    return 2 if ("v7" in kind or "7x" in kind) else 1


def _round_up(x, m):
    return ((x + m - 1) // m) * m


def _choose_tiling(batch, num_cores):
    """Pick (tile_rows, grid_steps, padded_batch).

    Single-TC chips: one big tile (fewest grid steps, ~0.35 us each).
    2-TC chips: an even 'parallel' grid so both cores get equal work.
    Tile ~= round_up(cdiv(B, steps), 8) minimizes row-padding waste.
    """
    b8 = _round_up(max(batch, 1), 8)
    steps = max(1, pl.cdiv(b8, MAX_TILE_B))
    if num_cores >= 2 and b8 > 8:
        steps = max(steps, 2)
        if steps % 2:
            steps += 1
    tile = _round_up(pl.cdiv(b8, steps), 8)
    return tile, steps, tile * steps


# ----------------------------------------------------------------------------
# Forward wrapper (hot path: optional row pad + pallas_call only)
# ----------------------------------------------------------------------------
@functools.partial(jax.jit, static_argnames=("tile_b",))
def generator_forward(z, prepared, tile_b=None):
    weights, biases = prepared
    B, K = z.shape
    emb = weights[3].shape[-1]

    if tile_b is not None:
        tile = max(8, (int(tile_b) // 8) * 8)
        steps = pl.cdiv(_round_up(B, 8), tile)
        b_pad = tile * steps
    else:
        tile, steps, b_pad = _choose_tiling(B, _num_tensorcores())

    zp = z if b_pad == B else jnp.pad(z, ((0, b_pad - B), (0, 0)))

    # z: (tile, K) with K == full array dim (no 64->128 pad needed).
    in_specs = [pl.BlockSpec((tile, K), lambda i: (i, 0))]
    operands = [zp]
    for w, b in zip(weights, biases):
        # Full-array blocks with a constant index map: fetched once, not
        # re-DMA'd on later grid steps.
        in_specs.append(pl.BlockSpec(w.shape, lambda i: (0, 0)))
        in_specs.append(pl.BlockSpec(b.shape, lambda i: (0, 0)))
        operands.extend([w, b])
    # Output directly at emb=32 lanes (block last dim == full array dim).
    out_spec = pl.BlockSpec((tile, emb), lambda i: (i, 0))

    flops = 2 * b_pad * (K * 256 + 256 * 512 + 512 * 256 + 256 * emb)
    bytes_accessed = (
        b_pad * K * 4
        + sum(int(w.size) * w.dtype.itemsize for w in weights)
        + sum(int(b.size) * 4 for b in biases)
        + b_pad * emb * 4
    )

    out = pl.pallas_call(
        generator_kernel,
        out_shape=jax.ShapeDtypeStruct((b_pad, emb), jnp.float32),
        grid_spec=pl.GridSpec(grid=(steps,), in_specs=in_specs,
                              out_specs=out_spec),
        compiler_params=pltpu.CompilerParams(
            dimension_semantics=("parallel",),
        ),
        cost_estimate=pl.CostEstimate(
            flops=flops,
            transcendentals=b_pad * emb,
            bytes_accessed=bytes_accessed,
        ),
    )(*operands)

    return out[:B] if b_pad != B else out


# ----------------------------------------------------------------------------
# Parameter init + references
# ----------------------------------------------------------------------------
def init_params(key, noise_dim=NOISE_DIM, embedding_dim=EMBEDDING_DIM):
    """Deterministic synthetic parameters (shapes match the PyTorch module)."""
    dims = [(noise_dim, 256), (256, 512), (512, 256), (256, embedding_dim)]
    params = []
    keys = jax.random.split(key, 32)
    ki = 0
    for li, (din, dout) in enumerate(dims):
        bound = 1.0 / np.sqrt(din)
        w = jax.random.uniform(keys[ki], (din, dout), jnp.float32, -bound, bound); ki += 1
        b = jax.random.uniform(keys[ki], (1, dout), jnp.float32, -bound, bound); ki += 1
        params.extend([w, b])
        if li < 3:  # BatchNorm1d after the first three Linears
            gamma = 1.0 + 0.1 * jax.random.normal(keys[ki], (1, dout), jnp.float32); ki += 1
            beta = 0.1 * jax.random.normal(keys[ki], (1, dout), jnp.float32); ki += 1
            rmean = 0.05 * jax.random.normal(keys[ki], (1, dout), jnp.float32); ki += 1
            rvar = 0.9 + 0.2 * jax.random.uniform(keys[ki], (1, dout), jnp.float32); ki += 1
            params.extend([gamma, beta, rmean, rvar])
    return tuple(params)


def generator_reference(z, params):
    """Pure-JAX f32 reference of the eval-mode forward pass (unfolded BN)."""
    (w1, b1, g1, be1, m1, v1,
     w2, b2, g2, be2, m2, v2,
     w3, b3, g3, be3, m3, v3,
     w4, b4) = params

    def block(h, w, b, g, be, m, v):
        h = h @ w + b
        h = (h - m) * jax.lax.rsqrt(v + BN_EPS) * g + be
        return jnp.where(h > 0, h, LEAKY_SLOPE * h)

    h = block(z, w1, b1, g1, be1, m1, v1)
    h = block(h, w2, b2, g2, be2, m2, v2)
    h = block(h, w3, b3, g3, be3, m3, v3)
    return jnp.tanh(h @ w4 + b4)


def generator_reference_quantized(z, prepared):
    """Pure-JAX reference using the same folded / low-precision weights."""
    weights, biases = prepared

    def dense(x, w, b):
        return jnp.dot(x.astype(w.dtype), w, preferred_element_type=jnp.float32) + b

    def leaky(h):
        return jnp.where(h > 0, h, LEAKY_SLOPE * h)

    h = leaky(dense(z, weights[0], biases[0]))
    h = leaky(dense(h, weights[1], biases[1]))
    h = leaky(dense(h, weights[2], biases[2]))
    return jnp.tanh(dense(h, weights[3], biases[3]))


# ----------------------------------------------------------------------------
# Smoke test
# ----------------------------------------------------------------------------
if __name__ == "__main__":
    key = jax.random.PRNGKey(0)
    k_z, k_p, k_z2 = jax.random.split(key, 3)
    params = init_params(k_p)
    prepared = prepare_params(params)          # BN fold + bf16 cast, done once

    # Small example batch.
    batch = 8
    z = jax.random.normal(k_z, (batch, NOISE_DIM), jnp.float32)
    out = jax.block_until_ready(generator_forward(z, prepared))
    assert out.shape == (batch, EMBEDDING_DIM)

    ref_q = generator_reference_quantized(z, prepared)         # same quantization
    np.testing.assert_allclose(np.asarray(out), np.asarray(ref_q),
                               atol=5e-4, rtol=5e-4)
    ref_f32 = generator_reference(z, params)                   # full-f32 semantics
    np.testing.assert_allclose(np.asarray(out), np.asarray(ref_f32),
                               atol=5e-2, rtol=0)

    # Larger, non-tile-multiple batch: exercises row padding and, on 2-TC
    # chips, the even "parallel" grid.
    batch2 = 300
    z2 = jax.random.normal(k_z2, (batch2, NOISE_DIM), jnp.float32)
    out2 = jax.block_until_ready(generator_forward(z2, prepared))
    assert out2.shape == (batch2, EMBEDDING_DIM)
    ref2_q = generator_reference_quantized(z2, prepared)
    np.testing.assert_allclose(np.asarray(out2), np.asarray(ref2_q),
                               atol=5e-4, rtol=5e-4)

    print("KERNEL_OK")
</pallas_src>

<mosaic_0001>
module attributes {stable_mosaic.version = 11 : i64} {
  func.func @generator_kernel(%arg0: i32, %arg1: memref<8x64xf32, #tpu.memory_space<vmem>>, %arg2: memref<64x256xbf16, #tpu.memory_space<vmem>>, %arg3: memref<1x256xf32, #tpu.memory_space<vmem>>, %arg4: memref<256x512xbf16, #tpu.memory_space<vmem>>, %arg5: memref<1x512xf32, #tpu.memory_space<vmem>>, %arg6: memref<512x256xbf16, #tpu.memory_space<vmem>>, %arg7: memref<1x256xf32, #tpu.memory_space<vmem>>, %arg8: memref<256x32xbf16, #tpu.memory_space<vmem>>, %arg9: memref<1x32xf32, #tpu.memory_space<vmem>>, %arg10: memref<8x32xf32, #tpu.memory_space<vmem>>) attributes {dimension_semantics = [#tpu.dimension_semantics<parallel>], iteration_bounds = array<i64: 1>, scalar_prefetch = 0 : i64, scratch_operands = 0 : i64, tpu.core_type = #tpu.core_type<tc>, window_params = [{transform_indices = @transform_0, window_bounds = array<i64: 8, 64>}, {pipeline_mode = #tpu.pipeline_mode<synchronous>, transform_indices = @transform_1, window_bounds = array<i64: 64, 256>}, {pipeline_mode = #tpu.pipeline_mode<synchronous>, transform_indices = @transform_2, window_bounds = array<i64: 1, 256>}, {pipeline_mode = #tpu.pipeline_mode<synchronous>, transform_indices = @transform_3, window_bounds = array<i64: 256, 512>}, {pipeline_mode = #tpu.pipeline_mode<synchronous>, transform_indices = @transform_4, window_bounds = array<i64: 1, 512>}, {pipeline_mode = #tpu.pipeline_mode<synchronous>, transform_indices = @transform_5, window_bounds = array<i64: 512, 256>}, {pipeline_mode = #tpu.pipeline_mode<synchronous>, transform_indices = @transform_6, window_bounds = array<i64: 1, 256>}, {pipeline_mode = #tpu.pipeline_mode<synchronous>, transform_indices = @transform_7, window_bounds = array<i64: 256, 32>}, {pipeline_mode = #tpu.pipeline_mode<synchronous>, transform_indices = @transform_8, window_bounds = array<i64: 1, 32>}, {transform_indices = @transform_9, window_bounds = array<i64: 8, 32>}]} {
    %c0 = arith.constant 0 : index
    %c0_0 = arith.constant 0 : index
    %0 = vector.load %arg1[%c0, %c0_0] : memref<8x64xf32, #tpu.memory_space<vmem>>, vector<8x64xf32>
    %c0_1 = arith.constant 0 : index
    %c0_2 = arith.constant 0 : index
    %1 = vector.load %arg2[%c0_1, %c0_2] : memref<64x256xbf16, #tpu.memory_space<vmem>>, vector<64x256xbf16>
    %2 = arith.truncf %0 : vector<8x64xf32> to vector<8x64xbf16>
    %cst = arith.constant dense<0.000000e+00> : vector<8x256xf32>
    %3 = tpu.matmul %2, %1, %cst {dimension_numbers = #tpu.dot_dimension_numbers<[1], [0], [0], [1], [0, 0, 1, 1], [], []>} : vector<8x64xbf16>, vector<64x256xbf16>, vector<8x256xf32> -> vector<8x256xf32>
    %c0_3 = arith.constant 0 : index
    %c0_4 = arith.constant 0 : index
    %4 = vector.load %arg3[%c0_3, %c0_4] : memref<1x256xf32, #tpu.memory_space<vmem>>, vector<1x256xf32>
    %5 = vector.broadcast %4 : vector<1x256xf32> to vector<8x256xf32>
    %6 = arith.addf %3, %5 : vector<8x256xf32>
    %cst_5 = arith.constant 0.000000e+00 : f32
    %7 = vector.broadcast %cst_5 : f32 to vector<8x256xf32>
    %8 = arith.cmpf ogt, %6, %7 : vector<8x256xf32>
    %cst_6 = arith.constant 2.000000e-01 : f32
    %9 = vector.broadcast %cst_6 : f32 to vector<8x256xf32>
    %10 = arith.mulf %9, %6 : vector<8x256xf32>
    %11 = arith.select %8, %6, %10 : vector<8x256xi1>, vector<8x256xf32>
    %c0_7 = arith.constant 0 : index
    %c0_8 = arith.constant 0 : index
    %12 = vector.load %arg4[%c0_7, %c0_8] : memref<256x512xbf16, #tpu.memory_space<vmem>>, vector<256x512xbf16>
    %13 = arith.truncf %11 : vector<8x256xf32> to vector<8x256xbf16>
    %cst_9 = arith.constant dense<0.000000e+00> : vector<8x512xf32>
    %14 = tpu.matmul %13, %12, %cst_9 {dimension_numbers = #tpu.dot_dimension_numbers<[1], [0], [0], [1], [0, 0, 1, 1], [], []>} : vector<8x256xbf16>, vector<256x512xbf16>, vector<8x512xf32> -> vector<8x512xf32>
    %c0_10 = arith.constant 0 : index
    %c0_11 = arith.constant 0 : index
    %15 = vector.load %arg5[%c0_10, %c0_11] : memref<1x512xf32, #tpu.memory_space<vmem>>, vector<1x512xf32>
    %16 = vector.broadcast %15 : vector<1x512xf32> to vector<8x512xf32>
    %17 = arith.addf %14, %16 : vector<8x512xf32>
    %cst_12 = arith.constant 0.000000e+00 : f32
    %18 = vector.broadcast %cst_12 : f32 to vector<8x512xf32>
    %19 = arith.cmpf ogt, %17, %18 : vector<8x512xf32>
    %cst_13 = arith.constant 2.000000e-01 : f32
    %20 = vector.broadcast %cst_13 : f32 to vector<8x512xf32>
    %21 = arith.mulf %20, %17 : vector<8x512xf32>
    %22 = arith.select %19, %17, %21 : vector<8x512xi1>, vector<8x512xf32>
    %c0_14 = arith.constant 0 : index
    %c0_15 = arith.constant 0 : index
    %23 = vector.load %arg6[%c0_14, %c0_15] : memref<512x256xbf16, #tpu.memory_space<vmem>>, vector<512x256xbf16>
    %24 = arith.truncf %22 : vector<8x512xf32> to vector<8x512xbf16>
    %cst_16 = arith.constant dense<0.000000e+00> : vector<8x256xf32>
    %25 = tpu.matmul %24, %23, %cst_16 {dimension_numbers = #tpu.dot_dimension_numbers<[1], [0], [0], [1], [0, 0, 1, 1], [], []>} : vector<8x512xbf16>, vector<512x256xbf16>, vector<8x256xf32> -> vector<8x256xf32>
    %c0_17 = arith.constant 0 : index
    %c0_18 = arith.constant 0 : index
    %26 = vector.load %arg7[%c0_17, %c0_18] : memref<1x256xf32, #tpu.memory_space<vmem>>, vector<1x256xf32>
    %27 = vector.broadcast %26 : vector<1x256xf32> to vector<8x256xf32>
    %28 = arith.addf %25, %27 : vector<8x256xf32>
    %cst_19 = arith.constant 0.000000e+00 : f32
    %29 = vector.broadcast %cst_19 : f32 to vector<8x256xf32>
    %30 = arith.cmpf ogt, %28, %29 : vector<8x256xf32>
    %cst_20 = arith.constant 2.000000e-01 : f32
    %31 = vector.broadcast %cst_20 : f32 to vector<8x256xf32>
    %32 = arith.mulf %31, %28 : vector<8x256xf32>
    %33 = arith.select %30, %28, %32 : vector<8x256xi1>, vector<8x256xf32>
    %c0_21 = arith.constant 0 : index
    %c0_22 = arith.constant 0 : index
    %34 = vector.load %arg8[%c0_21, %c0_22] : memref<256x32xbf16, #tpu.memory_space<vmem>>, vector<256x32xbf16>
    %35 = arith.truncf %33 : vector<8x256xf32> to vector<8x256xbf16>
    %cst_23 = arith.constant dense<0.000000e+00> : vector<8x32xf32>
    %36 = tpu.matmul %35, %34, %cst_23 {dimension_numbers = #tpu.dot_dimension_numbers<[1], [0], [0], [1], [0, 0, 1, 1], [], []>} : vector<8x256xbf16>, vector<256x32xbf16>, vector<8x32xf32> -> vector<8x32xf32>
    %c0_24 = arith.constant 0 : index
    %c0_25 = arith.constant 0 : index
    %37 = vector.load %arg9[%c0_24, %c0_25] : memref<1x32xf32, #tpu.memory_space<vmem>>, vector<1x32xf32>
    %38 = vector.broadcast %37 : vector<1x32xf32> to vector<8x32xf32>
    %39 = arith.addf %36, %38 : vector<8x32xf32>
    %40 = math.tanh %39 : vector<8x32xf32>
    %c0_26 = arith.constant 0 : index
    %c0_27 = arith.constant 0 : index
    %41 = vector.load %arg10[%c0_26, %c0_27] : memref<8x32xf32, #tpu.memory_space<vmem>>, vector<8x32xf32>
    tpu.vector_store %arg10[%c0_26, %c0_27], %40 {strides = array<i32>} : memref<8x32xf32, #tpu.memory_space<vmem>>, vector<8x32xf32>,
    return
  }
  func.func @transform_0(%arg0: i32) -> (i32, i32) {
    %c0_i32 = arith.constant 0 : i32
    %c0_i32_0 = arith.constant 0 : i32
    return %arg0, %c0_i32 : i32, i32
  }
  func.func @transform_1(%arg0: i32) -> (i32, i32) {
    %c0_i32 = arith.constant 0 : i32
    %c0_i32_0 = arith.constant 0 : i32
    %c0_i32_1 = arith.constant 0 : i32
    return %c0_i32, %c0_i32_0 : i32, i32
  }
  func.func @transform_2(%arg0: i32) -> (i32, i32) {
    %c0_i32 = arith.constant 0 : i32
    %c0_i32_0 = arith.constant 0 : i32
    %c0_i32_1 = arith.constant 0 : i32
    return %c0_i32, %c0_i32_0 : i32, i32
  }
  func.func @transform_3(%arg0: i32) -> (i32, i32) {
    %c0_i32 = arith.constant 0 : i32
    %c0_i32_0 = arith.constant 0 : i32
    %c0_i32_1 = arith.constant 0 : i32
    return %c0_i32, %c0_i32_0 : i32, i32
  }
  func.func @transform_4(%arg0: i32) -> (i32, i32) {
    %c0_i32 = arith.constant 0 : i32
    %c0_i32_0 = arith.constant 0 : i32
    %c0_i32_1 = arith.constant 0 : i32
    return %c0_i32, %c0_i32_0 : i32, i32
  }
  func.func @transform_5(%arg0: i32) -> (i32, i32) {
    %c0_i32 = arith.constant 0 : i32
    %c0_i32_0 = arith.constant 0 : i32
    %c0_i32_1 = arith.constant 0 : i32
    return %c0_i32, %c0_i32_0 : i32, i32
  }
  func.func @transform_6(%arg0: i32) -> (i32, i32) {
    %c0_i32 = arith.constant 0 : i32
    %c0_i32_0 = arith.constant 0 : i32
    %c0_i32_1 = arith.constant 0 : i32
    return %c0_i32, %c0_i32_0 : i32, i32
  }
  func.func @transform_7(%arg0: i32) -> (i32, i32) {
    %c0_i32 = arith.constant 0 : i32
    %c0_i32_0 = arith.constant 0 : i32
    %c0_i32_1 = arith.constant 0 : i32
    return %c0_i32, %c0_i32_0 : i32, i32
  }
  func.func @transform_8(%arg0: i32) -> (i32, i32) {
    %c0_i32 = arith.constant 0 : i32
    %c0_i32_0 = arith.constant 0 : i32
    %c0_i32_1 = arith.constant 0 : i32
    return %c0_i32, %c0_i32_0 : i32, i32
  }
  func.func @transform_9(%arg0: i32) -> (i32, i32) {
    %c0_i32 = arith.constant 0 : i32
    %c0_i32_0 = arith.constant 0 : i32
    return %arg0, %c0_i32 : i32, i32
  }
}

</mosaic_0001>

<llo_original>
// kernel: generator_forward.1
$region0: #{generator_forward.1}
  #allocation0 [shape = 'u32[]', space=smem, size = 0x4, offset = 0x4, fixed_abs, tag = 'smem constant byte address 0x4 - core index']
  #allocation1 [shape = 'u32[144,128]{1,0:T(1,128)}', space=vmem, size = 0x12000, scoped, tag = 'internal scratch']
  %s0 = inlined_call_operand.vmem [shape: f32[8,64], index: 0, kind: input, shape index: {}]
  %s1 = inlined_call_operand.vmem [shape: bf16[64,256], index: 1, kind: input, shape index: {}]
  %s2 = inlined_call_operand.vmem [shape: f32[1,256], index: 2, kind: input, shape index: {}]
  %s3 = inlined_call_operand.hbm [shape: bf16[256,512], index: 3, kind: input, shape index: {}]
  %s4 = inlined_call_operand.vmem [shape: f32[1,512], index: 4, kind: input, shape index: {}]
  %s5 = inlined_call_operand.hbm [shape: bf16[512,256], index: 5, kind: input, shape index: {}]
  %s6 = inlined_call_operand.vmem [shape: f32[1,256], index: 6, kind: input, shape index: {}]
  %s7 = inlined_call_operand.vmem [shape: bf16[256,32], index: 7, kind: input, shape index: {}]
  %s8 = inlined_call_operand.vmem [shape: f32[1,32], index: 8, kind: input, shape index: {}]
  %s9 = inlined_call_operand.hbm [shape: f32[8,32], index: 9, kind: output, shape index: {}]
  %s10 = sld [smem:[#allocation0]]
  $region54: #{generator_forward.1} parent=0
    _
  %s12 = ssub.s32 1, %s10
  %s13 = scalar_select 0, %s12, %s10
  $region1: #{generator_forward.1} parent=0
    #allocation2 [shape = 'u8[262144]{0}', space=vmem, size = 0x40000, scoped, tag = 'input window, operand 3, single buffered']
    #allocation3 [shape = 's32[1]{0}', space=sflag, size = 0x4, scoped, tag = 'scoped memory for generator_forward.1']
    #allocation4 [shape = 's32[1]{0}', space=sflag, size = 0x4, scoped, tag = 'scoped memory for generator_forward.1']
    #allocation5 [shape = 'u8[262144]{0}', space=vmem, size = 0x40000, scoped, tag = 'input window, operand 5, single buffered']
    #allocation6 [shape = 's32[1]{0}', space=sflag, size = 0x4, scoped, tag = 'scoped memory for generator_forward.1']
    #allocation7 [shape = 'u8[4096]{0}', space=vmem, size = 0x1000, scoped, tag = 'output window, operand 0, single buffered']
    %14 = vsyncpa [#allocation3], 0
    %15 = vsyncpa [#allocation6], 0
    %16 = vsyncpa [#allocation4], 0
    // Predicated region
    $region2: #{generator_forward.1} parent=1 // pred_check
      _
    $region3: #{generator_forward.1} parent=1 // pred_check_branch
      %18 = sbr.rel (0) target = $region5
    $region4: #{generator_forward.1} parent=1 // pred_region
      _
    $region5: #{generator_forward.1} parent=1 // pred_fallthru
      _
    // Predicated region
    $region6: #{generator_forward.1} parent=1 // pred_check
      _
    $region7: #{generator_forward.1} parent=1 // pred_check_branch
      %20 = sbr.rel (0) target = $region9
    $region8: #{generator_forward.1} parent=1 // pred_region
      _
    $region9: #{generator_forward.1} parent=1 // pred_fallthru
      _
    // Predicated region
    $region10: #{generator_forward.1} parent=1 // pred_check
      _
    $region11: #{generator_forward.1} parent=1 // pred_check_branch
      %22 = sbr.rel (0) target = $region13
    $region12: #{generator_forward.1} parent=1 // pred_region
      _
    $region13: #{generator_forward.1} parent=1 // pred_fallthru
      _
    // Predicated region
    $region14: #{generator_forward.1} parent=1 // pred_check
      _
    $region15: #{generator_forward.1} parent=1 // pred_check_branch
      %24 = sbr.rel (0) target = $region17
    $region16: #{generator_forward.1} parent=1 // pred_region
      %s26 = ssub.s32 8192, 8192
      %27 = vsyncadd [#allocation3], %s26
      %s28 = sshll.u32 [#allocation2], 4
      %s29 = int_to_ptr.vmem [resolvable:$true] %s28
      %34 = dma.hbm_to_vmem [thread:$0]  %s3, 8192, %s29, [#allocation3], 256, 256, 16
    $region17: #{generator_forward.1} parent=1 // pred_fallthru
      _
    // Predicated region
    $region18: #{generator_forward.1} parent=1 // pred_check
      _
    $region19: #{generator_forward.1} parent=1 // pred_check_branch
      %36 = sbr.rel (0) target = $region21
    $region20: #{generator_forward.1} parent=1 // pred_region
      _
    $region21: #{generator_forward.1} parent=1 // pred_fallthru
      _
    // Predicated region
    $region22: #{generator_forward.1} parent=1 // pred_check
      _
    $region23: #{generator_forward.1} parent=1 // pred_check_branch
      %38 = sbr.rel (0) target = $region25
    $region24: #{generator_forward.1} parent=1 // pred_region
      %s40 = ssub.s32 8192, 8192
      %41 = vsyncadd [#allocation6], %s40
      %s42 = sshll.u32 [#allocation5], 4
      %s43 = int_to_ptr.vmem [resolvable:$true] %s42
      %48 = dma.hbm_to_vmem [thread:$0]  %s5, 8192, %s43, [#allocation6], 128, 128, 8
    $region25: #{generator_forward.1} parent=1 // pred_fallthru
      _
    // Predicated region
    $region26: #{generator_forward.1} parent=1 // pred_check
      _
    $region27: #{generator_forward.1} parent=1 // pred_check_branch
      %50 = sbr.rel (0) target = $region29
    $region28: #{generator_forward.1} parent=1 // pred_region
      _
    $region29: #{generator_forward.1} parent=1 // pred_fallthru
      _
    // Predicated region
    $region30: #{generator_forward.1} parent=1 // pred_check
      _
    $region31: #{generator_forward.1} parent=1 // pred_check_branch
      %52 = sbr.rel (0) target = $region33
    $region32: #{generator_forward.1} parent=1 // pred_region
      _
    $region33: #{generator_forward.1} parent=1 // pred_fallthru
      _
    // Predicated region
    $region34: #{generator_forward.1} parent=1 // pred_check
      _
    $region35: #{generator_forward.1} parent=1 // pred_check_branch
      %54 = sbr.rel (0) target = $region37
    $region36: #{generator_forward.1} parent=1 // pred_region
      _
    $region37: #{generator_forward.1} parent=1 // pred_fallthru
      _
    // Predicated region
    $region38: #{generator_forward.1} parent=1 // pred_check
      _
    $region39: #{generator_forward.1} parent=1 // pred_check_branch
      %56 = sbr.rel (0) target = $region41
    $region40: #{generator_forward.1} parent=1 // pred_region
      %57 = dma.done [#allocation3], 8192
    $region41: #{generator_forward.1} parent=1 // pred_fallthru
      _
    // Predicated region
    $region42: #{generator_forward.1} parent=1 // pred_check
      _
    $region43: #{generator_forward.1} parent=1 // pred_check_branch
      %59 = sbr.rel (0) target = $region45
    $region44: #{generator_forward.1} parent=1 // pred_region
      %60 = dma.done [#allocation6], 8192
    $region45: #{generator_forward.1} parent=1 // pred_fallthru
      _
    %v62 = vld [vmem:[%s0] sm:$0xff]
    %v63 = vld [vmem:[%s1] sm:$0xff]
    %v64 = vld [vmem:[%s1 + $0x8] sm:$0xff]
    %v65 = vld [vmem:[%s1 + $0x10] sm:$0xff]
    %v66 = vld [vmem:[%s1 + $0x18] sm:$0xff]
    %v67 = vld [vmem:[%s1 + $0x20] sm:$0xff]
    %v68 = vld [vmem:[%s1 + $0x28] sm:$0xff]
    %v69 = vld [vmem:[%s1 + $0x30] sm:$0xff]
    %v70 = vld [vmem:[%s1 + $0x38] sm:$0xff]
    %v71 = vpack.c.bf16 %v62, %v62
    %v72 = vld [vmem:[%s2] sm:$0x3]
    %v74 = vlaneseq
    %v75 = vshrl.u32 %v74, 7
    %v76 = vsub.s32 0, %v75
    %v77 = vrot.slane %v72, %v76
    %v78 = vlaneseq
    %v79 = vshrl.u32 %v78, 7
    %v80 = vsub.s32 1, %v79
    %v81 = vrot.slane %v72, %v80
    %v92 = vunpack.c.l.b16 %v63
    %v93 = vunpack.c.h.b16 %v63
    %v94 = vunpack.c.l.b16 %v64
    %v95 = vunpack.c.h.b16 %v64
    %v96 = vunpack.c.l.b16 %v65
    %v97 = vunpack.c.h.b16 %v65
    %v98 = vunpack.c.l.b16 %v66
    %v99 = vunpack.c.h.b16 %v66
    %v100 = vunpack.c.l.b16 %v67
    %v101 = vunpack.c.h.b16 %v67
    %v102 = vunpack.c.l.b16 %v68
    %v103 = vunpack.c.h.b16 %v68
    %v104 = vunpack.c.l.b16 %v69
    %v105 = vunpack.c.h.b16 %v69
    %v106 = vunpack.c.l.b16 %v70
    %v107 = vunpack.c.h.b16 %v70
    %v108 = vpack.c.b16 %v94, %v92
    %v109 = vpack.c.b16 %v95, %v93
    %v110 = vpack.c.b16 %v98, %v96
    %v111 = vpack.c.b16 %v99, %v97
    %v112 = vpack.c.b16 %v102, %v100
    %v113 = vpack.c.b16 %v103, %v101
    %v114 = vpack.c.b16 %v106, %v104
    %v115 = vpack.c.b16 %v107, %v105
    %vm124 = vcmask 523264
    %v126 = vsel %vm124, %v71, 0
    %128 = vmatprep.subr.bf16.mxu0 %v109
    %129 = vmatpush1.bf16.msra.mxu0 %v108
    %130 = vmatprep.subr.bf16.mxu0 %v111
    %131 = vmatpush1.bf16.msra.mxu0 %v110
    %132 = vmatprep.subr.bf16.mxu0 %v113
    %133 = vmatpush1.bf16.msra.mxu0 %v112
    %134 = vmatprep.subr.bf16.mxu0 %v115
    %135 = vmatpush1.bf16.msra.mxu0 %v114
    %136 = vmatprep.subr.bf16.mxu0 0
    %137 = vmatpush1.bf16.msra.mxu0 0
    %138 = vmatprep.subr.bf16.mxu0 0
    %139 = vmatpush1.bf16.msra.mxu0 0
    %140 = vmatprep.subr.bf16.mxu0 0
    %141 = vmatpush1.bf16.msra.mxu0 0
    %142 = vmatprep.subr.bf16.mxu0 0
    %143 = vmatpush1.bf16.msra.mxu0 0
    %144 = vmatprep.subr.bf16.mxu0 0
    %145 = vmatpush1.bf16.msra.mxu0 0
    %146 = vmatprep.subr.bf16.mxu0 0
    %147 = vmatpush1.bf16.msra.mxu0 0
    %148 = vmatprep.subr.bf16.mxu0 0
    %149 = vmatpush1.bf16.msra.mxu0 0
    %150 = vmatprep.subr.bf16.mxu0 0
    %151 = vmatpush1.bf16.msra.mxu0 0
    %152 = vmatprep.subr.bf16.mxu0 0
    %153 = vmatpush1.bf16.msra.mxu0 0
    %154 = vmatprep.subr.bf16.mxu0 0
    %155 = vmatpush1.bf16.msra.mxu0 0
    %156 = vmatprep.subr.bf16.mxu0 0
    %157 = vmatpush1.bf16.msra.mxu0 0
    %158 = vmatprep.subr.bf16.mxu0 0
    %159 = vmatpush1.bf16.msra.mxu0 0
    %160 = vmatprep.mubr.bf16.mxu0 0
    %161 = vmatmul.mubr.bf16.gmra.mrb[0].mxu0 %v126
    %v162 = vpop.f32.mrb[0].mxu0
    %v163 = vadd.f32 %v77, %v162
    %v164 = vpop.f32.mrb[0].mxu0
    %v165 = vadd.f32 %v81, %v164
    %v166 = vpop.f32.mrb[0].mxu0
    %v167 = vpop.f32.mrb[0].mxu0
    %168 = vdwg.mxu0
    %vm169 = vcmp.gt.f32.partialorder %v163, 0.0
    %vm170 = vcmp.gt.f32.partialorder %v165, 0.0
    %v171 = vmul.f32 %v163, 0.2
    %v172 = vmul.f32 %v165, 0.2
    %v173 = vsel %vm169, %v163, %v171
    %v174 = vsel %vm170, %v165, %v172
    %v175 = vld [vmem:[#allocation2] sm:$0xff]
    %v176 = vld [vmem:[#allocation2 + $0x8] sm:$0xff]
    %v177 = vld [vmem:[#allocation2 + $0x10] sm:$0xff]
    %v178 = vld [vmem:[#allocation2 + $0x18] sm:$0xff]
    %v179 = vld [vmem:[#allocation2 + $0x20] sm:$0xff]
    %v180 = vld [vmem:[#allocation2 + $0x28] sm:$0xff]
    %v181 = vld [vmem:[#allocation2 + $0x30] sm:$0xff]
    %v182 = vld [vmem:[#allocation2 + $0x38] sm:$0xff]
    %v183 = vld [vmem:[#allocation2 + $0x40] sm:$0xff]
    %v184 = vld [vmem:[#allocation2 + $0x48] sm:$0xff]
    %v185 = vld [vmem:[#allocation2 + $0x50] sm:$0xff]
    %v186 = vld [vmem:[#allocation2 + $0x58] sm:$0xff]
    %v187 = vld [vmem:[#allocation2 + $0x60] sm:$0xff]
    %v188 = vld [vmem:[#allocation2 + $0x68] sm:$0xff]
    %v189 = vld [vmem:[#allocation2 + $0x70] sm:$0xff]
    %v190 = vld [vmem:[#allocation2 + $0x78] sm:$0xff]
    %v191 = vld [vmem:[#allocation2 + $0x80] sm:$0xff]
    %v192 = vld [vmem:[#allocation2 + $0x88] sm:$0xff]
    %v193 = vld [vmem:[#allocation2 + $0x90] sm:$0xff]
    %v194 = vld [vmem:[#allocation2 + $0x98] sm:$0xff]
    %v195 = vld [vmem:[#allocation2 + $0xa0] sm:$0xff]
    %v196 = vld [vmem:[#allocation2 + $0xa8] sm:$0xff]
    %v197 = vld [vmem:[#allocation2 + $0xb0] sm:$0xff]
    %v198 = vld [vmem:[#allocation2 + $0xb8] sm:$0xff]
    %v199 = vld [vmem:[#allocation2 + $0xc0] sm:$0xff]
    %v200 = vld [vmem:[#allocation2 + $0xc8] sm:$0xff]
    %v201 = vld [vmem:[#allocation2 + $0xd0] sm:$0xff]
    %v202 = vld [vmem:[#allocation2 + $0xd8] sm:$0xff]
    %v203 = vld [vmem:[#allocation2 + $0xe0] sm:$0xff]
    %v204 = vld [vmem:[#allocation2 + $0xe8] sm:$0xff]
    %v205 = vld [vmem:[#allocation2 + $0xf0] sm:$0xff]
    %v206 = vld [vmem:[#allocation2 + $0xf8] sm:$0xff]
    %v207 = vld [vmem:[#allocation2 + $0x100] sm:$0xff]
    %v208 = vld [vmem:[#allocation2 + $0x108] sm:$0xff]
    %v209 = vld [vmem:[#allocation2 + $0x110] sm:$0xff]
    %v210 = vld [vmem:[#allocation2 + $0x118] sm:$0xff]
    %v211 = vld [vmem:[#allocation2 + $0x120] sm:$0xff]
    %v212 = vld [vmem:[#allocation2 + $0x128] sm:$0xff]
    %v213 = vld [vmem:[#allocation2 + $0x130] sm:$0xff]
    %v214 = vld [vmem:[#allocation2 + $0x138] sm:$0xff]
    %v215 = vld [vmem:[#allocation2 + $0x140] sm:$0xff]
    %v216 = vld [vmem:[#allocation2 + $0x148] sm:$0xff]
    %v217 = vld [vmem:[#allocation2 + $0x150] sm:$0xff]
    %v218 = vld [vmem:[#allocation2 + $0x158] sm:$0xff]
    %v219 = vld [vmem:[#allocation2 + $0x160] sm:$0xff]
    %v220 = vld [vmem:[#allocation2 + $0x168] sm:$0xff]
    %v221 = vld [vmem:[#allocation2 + $0x170] sm:$0xff]
    %v222 = vld [vmem:[#allocation2 + $0x178] sm:$0xff]
    %v223 = vld [vmem:[#allocation2 + $0x180] sm:$0xff]
    %v224 = vld [vmem:[#allocation2 + $0x188] sm:$0xff]
    %v225 = vld [vmem:[#allocation2 + $0x190] sm:$0xff]
    %v226 = vld [vmem:[#allocation2 + $0x198] sm:$0xff]
    %v227 = vld [vmem:[#allocation2 + $0x1a0] sm:$0xff]
    %v228 = vld [vmem:[#allocation2 + $0x1a8] sm:$0xff]
    %v229 = vld [vmem:[#allocation2 + $0x1b0] sm:$0xff]
    %v230 = vld [vmem:[#allocation2 + $0x1b8] sm:$0xff]
    %v231 = vld [vmem:[#allocation2 + $0x1c0] sm:$0xff]
    %v232 = vld [vmem:[#allocation2 + $0x1c8] sm:$0xff]
    %v233 = vld [vmem:[#allocation2 + $0x1d0] sm:$0xff]
    %v234 = vld [vmem:[#allocation2 + $0x1d8] sm:$0xff]
    %v235 = vld [vmem:[#allocation2 + $0x1e0] sm:$0xff]
    %v236 = vld [vmem:[#allocation2 + $0x1e8] sm:$0xff]
    %v237 = vld [vmem:[#allocation2 + $0x1f0] sm:$0xff]
    %v238 = vld [vmem:[#allocation2 + $0x1f8] sm:$0xff]
    %v239 = vpack.c.bf16 %v173, %v173
    %v240 = vpack.c.bf16 %v174, %v174
    %v241 = vld [vmem:[%s4] sm:$0xf]
    %v243 = vlaneseq
    %v244 = vshrl.u32 %v243, 7
    %v245 = vsub.s32 0, %v244
    %v246 = vrot.slane %v241, %v245
    %v247 = vlaneseq
    %v248 = vshrl.u32 %v247, 7
    %v249 = vsub.s32 1, %v248
    %v250 = vrot.slane %v241, %v249
    %v251 = vlaneseq
    %v252 = vshrl.u32 %v251, 7
    %v253 = vsub.s32 2, %v252
    %v254 = vrot.slane %v241, %v253
    %v255 = vlaneseq
    %v256 = vshrl.u32 %v255, 7
    %v257 = vsub.s32 3, %v256
    %v258 = vrot.slane %v241, %v257
    %v327 = vunpack.c.l.b16 %v175
    %v328 = vunpack.c.h.b16 %v175
    %v329 = vunpack.c.l.b16 %v176
    %v330 = vunpack.c.h.b16 %v176
    %v331 = vunpack.c.l.b16 %v177
    %v332 = vunpack.c.h.b16 %v177
    %v333 = vunpack.c.l.b16 %v178
    %v334 = vunpack.c.h.b16 %v178
    %v335 = vunpack.c.l.b16 %v179
    %v336 = vunpack.c.h.b16 %v179
    %v337 = vunpack.c.l.b16 %v180
    %v338 = vunpack.c.h.b16 %v180
    %v339 = vunpack.c.l.b16 %v181
    %v340 = vunpack.c.h.b16 %v181
    %v341 = vunpack.c.l.b16 %v182
    %v342 = vunpack.c.h.b16 %v182
    %v343 = vunpack.c.l.b16 %v183
    %v344 = vunpack.c.h.b16 %v183
    %v345 = vunpack.c.l.b16 %v184
    %v346 = vunpack.c.h.b16 %v184
    %v347 = vunpack.c.l.b16 %v185
    %v348 = vunpack.c.h.b16 %v185
    %v349 = vunpack.c.l.b16 %v186
    %v350 = vunpack.c.h.b16 %v186
    %v351 = vunpack.c.l.b16 %v187
    %v352 = vunpack.c.h.b16 %v187
    %v353 = vunpack.c.l.b16 %v188
    %v354 = vunpack.c.h.b16 %v188
    %v355 = vunpack.c.l.b16 %v189
    %v356 = vunpack.c.h.b16 %v189
    %v357 = vunpack.c.l.b16 %v190
    %v358 = vunpack.c.h.b16 %v190
    %v359 = vunpack.c.l.b16 %v191
    %v360 = vunpack.c.h.b16 %v191
    %v361 = vunpack.c.l.b16 %v192
    %v362 = vunpack.c.h.b16 %v192
    %v363 = vunpack.c.l.b16 %v193
    %v364 = vunpack.c.h.b16 %v193
    %v365 = vunpack.c.l.b16 %v194
    %v366 = vunpack.c.h.b16 %v194
    %v367 = vunpack.c.l.b16 %v195
    %v368 = vunpack.c.h.b16 %v195
    %v369 = vunpack.c.l.b16 %v196
    %v370 = vunpack.c.h.b16 %v196
    %v371 = vunpack.c.l.b16 %v197
    %v372 = vunpack.c.h.b16 %v197
    %v373 = vunpack.c.l.b16 %v198
    %v374 = vunpack.c.h.b16 %v198
    %v375 = vunpack.c.l.b16 %v199
    %v376 = vunpack.c.h.b16 %v199
    %v377 = vunpack.c.l.b16 %v200
    %v378 = vunpack.c.h.b16 %v200
    %v379 = vunpack.c.l.b16 %v201
    %v380 = vunpack.c.h.b16 %v201
    %v381 = vunpack.c.l.b16 %v202
    %v382 = vunpack.c.h.b16 %v202
    %v383 = vunpack.c.l.b16 %v203
    %v384 = vunpack.c.h.b16 %v203
    %v385 = vunpack.c.l.b16 %v204
    %v386 = vunpack.c.h.b16 %v204
    %v387 = vunpack.c.l.b16 %v205
    %v388 = vunpack.c.h.b16 %v205
    %v389 = vunpack.c.l.b16 %v206
    %v390 = vunpack.c.h.b16 %v206
    %v391 = vunpack.c.l.b16 %v207
    %v392 = vunpack.c.h.b16 %v207
    %v393 = vunpack.c.l.b16 %v208
    %v394 = vunpack.c.h.b16 %v208
    %v395 = vunpack.c.l.b16 %v209
    %v396 = vunpack.c.h.b16 %v209
    %v397 = vunpack.c.l.b16 %v210
    %v398 = vunpack.c.h.b16 %v210
    %v399 = vunpack.c.l.b16 %v211
    %v400 = vunpack.c.h.b16 %v211
    %v401 = vunpack.c.l.b16 %v212
    %v402 = vunpack.c.h.b16 %v212
    %v403 = vunpack.c.l.b16 %v213
    %v404 = vunpack.c.h.b16 %v213
    %v405 = vunpack.c.l.b16 %v214
    %v406 = vunpack.c.h.b16 %v214
    %v407 = vunpack.c.l.b16 %v215
    %v408 = vunpack.c.h.b16 %v215
    %v409 = vunpack.c.l.b16 %v216
    %v410 = vunpack.c.h.b16 %v216
    %v411 = vunpack.c.l.b16 %v217
    %v412 = vunpack.c.h.b16 %v217
    %v413 = vunpack.c.l.b16 %v218
    %v414 = vunpack.c.h.b16 %v218
    %v415 = vunpack.c.l.b16 %v219
    %v416 = vunpack.c.h.b16 %v219
    %v417 = vunpack.c.l.b16 %v220
    %v418 = vunpack.c.h.b16 %v220
    %v419 = vunpack.c.l.b16 %v221
    %v420 = vunpack.c.h.b16 %v221
    %v421 = vunpack.c.l.b16 %v222
    %v422 = vunpack.c.h.b16 %v222
    %v423 = vunpack.c.l.b16 %v223
    %v424 = vunpack.c.h.b16 %v223
    %v425 = vunpack.c.l.b16 %v224
    %v426 = vunpack.c.h.b16 %v224
    %v427 = vunpack.c.l.b16 %v225
    %v428 = vunpack.c.h.b16 %v225
    %v429 = vunpack.c.l.b16 %v226
    %v430 = vunpack.c.h.b16 %v226
    %v431 = vunpack.c.l.b16 %v227
    %v432 = vunpack.c.h.b16 %v227
    %v433 = vunpack.c.l.b16 %v228
    %v434 = vunpack.c.h.b16 %v228
    %v435 = vunpack.c.l.b16 %v229
    %v436 = vunpack.c.h.b16 %v229
    %v437 = vunpack.c.l.b16 %v230
    %v438 = vunpack.c.h.b16 %v230
    %v439 = vunpack.c.l.b16 %v231
    %v440 = vunpack.c.h.b16 %v231
    %v441 = vunpack.c.l.b16 %v232
    %v442 = vunpack.c.h.b16 %v232
    %v443 = vunpack.c.l.b16 %v233
    %v444 = vunpack.c.h.b16 %v233
    %v445 = vunpack.c.l.b16 %v234
    %v446 = vunpack.c.h.b16 %v234
    %v447 = vunpack.c.l.b16 %v235
    %v448 = vunpack.c.h.b16 %v235
    %v449 = vunpack.c.l.b16 %v236
    %v450 = vunpack.c.h.b16 %v236
    %v451 = vunpack.c.l.b16 %v237
    %v452 = vunpack.c.h.b16 %v237
    %v453 = vunpack.c.l.b16 %v238
    %v454 = vunpack.c.h.b16 %v238
    %v455 = vpack.c.b16 %v331, %v327
    %v456 = vpack.c.b16 %v332, %v328
    %v457 = vpack.c.b16 %v333, %v329
    %v458 = vpack.c.b16 %v334, %v330
    %v459 = vpack.c.b16 %v339, %v335
    %v460 = vpack.c.b16 %v340, %v336
    %v461 = vpack.c.b16 %v341, %v337
    %v462 = vpack.c.b16 %v342, %v338
    %v463 = vpack.c.b16 %v347, %v343
    %v464 = vpack.c.b16 %v348, %v344
    %v465 = vpack.c.b16 %v349, %v345
    %v466 = vpack.c.b16 %v350, %v346
    %v467 = vpack.c.b16 %v355, %v351
    %v468 = vpack.c.b16 %v356, %v352
    %v469 = vpack.c.b16 %v357, %v353
    %v470 = vpack.c.b16 %v358, %v354
    %v471 = vpack.c.b16 %v363, %v359
    %v472 = vpack.c.b16 %v364, %v360
    %v473 = vpack.c.b16 %v365, %v361
    %v474 = vpack.c.b16 %v366, %v362
    %v475 = vpack.c.b16 %v371, %v367
    %v476 = vpack.c.b16 %v372, %v368
    %v477 = vpack.c.b16 %v373, %v369
    %v478 = vpack.c.b16 %v374, %v370
    %v479 = vpack.c.b16 %v379, %v375
    %v480 = vpack.c.b16 %v380, %v376
    %v481 = vpack.c.b16 %v381, %v377
    %v482 = vpack.c.b16 %v382, %v378
    %v483 = vpack.c.b16 %v387, %v383
    %v484 = vpack.c.b16 %v388, %v384
    %v485 = vpack.c.b16 %v389, %v385
    %v486 = vpack.c.b16 %v390, %v386
    %v487 = vpack.c.b16 %v395, %v391
    %v488 = vpack.c.b16 %v396, %v392
    %v489 = vpack.c.b16 %v397, %v393
    %v490 = vpack.c.b16 %v398, %v394
    %v491 = vpack.c.b16 %v403, %v399
    %v492 = vpack.c.b16 %v404, %v400
    %v493 = vpack.c.b16 %v405, %v401
    %v494 = vpack.c.b16 %v406, %v402
    %v495 = vpack.c.b16 %v411, %v407
    %v496 = vpack.c.b16 %v412, %v408
    %v497 = vpack.c.b16 %v413, %v409
    %v498 = vpack.c.b16 %v414, %v410
    %v499 = vpack.c.b16 %v419, %v415
    %v500 = vpack.c.b16 %v420, %v416
    %v501 = vpack.c.b16 %v421, %v417
    %v502 = vpack.c.b16 %v422, %v418
    %v503 = vpack.c.b16 %v427, %v423
    %v504 = vpack.c.b16 %v428, %v424
    %v505 = vpack.c.b16 %v429, %v425
    %v506 = vpack.c.b16 %v430, %v426
    %v507 = vpack.c.b16 %v435, %v431
    %v508 = vpack.c.b16 %v436, %v432
    %v509 = vpack.c.b16 %v437, %v433
    %v510 = vpack.c.b16 %v438, %v434
    %v511 = vpack.c.b16 %v443, %v439
    %v512 = vpack.c.b16 %v444, %v440
    %v513 = vpack.c.b16 %v445, %v441
    %v514 = vpack.c.b16 %v446, %v442
    %v515 = vpack.c.b16 %v451, %v447
    %v516 = vpack.c.b16 %v452, %v448
    %v517 = vpack.c.b16 %v453, %v449
    %v518 = vpack.c.b16 %v454, %v450
    %583 = vmatprep.subr.bf16.mxu0 %v456
    %584 = vmatpush1.bf16.msra.mxu0 %v455
    %585 = vmatprep.subr.bf16.mxu0 %v460
    %586 = vmatpush1.bf16.msra.mxu0 %v459
    %587 = vmatprep.subr.bf16.mxu0 %v464
    %588 = vmatpush1.bf16.msra.mxu0 %v463
    %589 = vmatprep.subr.bf16.mxu0 %v468
    %590 = vmatpush1.bf16.msra.mxu0 %v467
    %591 = vmatprep.subr.bf16.mxu0 %v472
    %592 = vmatpush1.bf16.msra.mxu0 %v471
    %593 = vmatprep.subr.bf16.mxu0 %v476
    %594 = vmatpush1.bf16.msra.mxu0 %v475
    %595 = vmatprep.subr.bf16.mxu0 %v480
    %596 = vmatpush1.bf16.msra.mxu0 %v479
    %597 = vmatprep.subr.bf16.mxu0 %v484
    %598 = vmatpush1.bf16.msra.mxu0 %v483
    %599 = vmatprep.subr.bf16.mxu0 %v488
    %600 = vmatpush1.bf16.msra.mxu0 %v487
    %601 = vmatprep.subr.bf16.mxu0 %v492
    %602 = vmatpush1.bf16.msra.mxu0 %v491
    %603 = vmatprep.subr.bf16.mxu0 %v496
    %604 = vmatpush1.bf16.msra.mxu0 %v495
    %605 = vmatprep.subr.bf16.mxu0 %v500
    %606 = vmatpush1.bf16.msra.mxu0 %v499
    %607 = vmatprep.subr.bf16.mxu0 %v504
    %608 = vmatpush1.bf16.msra.mxu0 %v503
    %609 = vmatprep.subr.bf16.mxu0 %v508
    %610 = vmatpush1.bf16.msra.mxu0 %v507
    %611 = vmatprep.subr.bf16.mxu0 %v512
    %612 = vmatpush1.bf16.msra.mxu0 %v511
    %613 = vmatprep.subr.bf16.mxu0 %v516
    %614 = vmatpush1.bf16.msra.mxu0 %v515
    %615 = vmatprep.mubr.bf16.mxu0 %v240
    %616 = vmatmul.mubr.bf16.gmra.mrb[0].mxu0 %v239
    %v617 = vpop.f32.mrb[0].mxu0
    %v618 = vadd.f32 %v246, %v617
    %v619 = vpop.f32.mrb[0].mxu0
    %v620 = vadd.f32 %v250, %v619
    %v621 = vpop.f32.mrb[0].mxu0
    %v622 = vpop.f32.mrb[0].mxu0
    %623 = vdwg.mxu0
    %624 = vmatprep.subr.bf16.mxu0 %v458
    %625 = vmatpush1.bf16.msra.mxu0 %v457
    %626 = vmatprep.subr.bf16.mxu0 %v462
    %627 = vmatpush1.bf16.msra.mxu0 %v461
    %628 = vmatprep.subr.bf16.mxu0 %v466
    %629 = vmatpush1.bf16.msra.mxu0 %v465
    %630 = vmatprep.subr.bf16.mxu0 %v470
    %631 = vmatpush1.bf16.msra.mxu0 %v469
    %632 = vmatprep.subr.bf16.mxu0 %v474
    %633 = vmatpush1.bf16.msra.mxu0 %v473
    %634 = vmatprep.subr.bf16.mxu0 %v478
    %635 = vmatpush1.bf16.msra.mxu0 %v477
    %636 = vmatprep.subr.bf16.mxu0 %v482
    %637 = vmatpush1.bf16.msra.mxu0 %v481
    %638 = vmatprep.subr.bf16.mxu0 %v486
    %639 = vmatpush1.bf16.msra.mxu0 %v485
    %640 = vmatprep.subr.bf16.mxu0 %v490
    %641 = vmatpush1.bf16.msra.mxu0 %v489
    %642 = vmatprep.subr.bf16.mxu0 %v494
    %643 = vmatpush1.bf16.msra.mxu0 %v493
    %644 = vmatprep.subr.bf16.mxu0 %v498
    %645 = vmatpush1.bf16.msra.mxu0 %v497
    %646 = vmatprep.subr.bf16.mxu0 %v502
    %647 = vmatpush1.bf16.msra.mxu0 %v501
    %648 = vmatprep.subr.bf16.mxu0 %v506
    %649 = vmatpush1.bf16.msra.mxu0 %v505
    %650 = vmatprep.subr.bf16.mxu0 %v510
    %651 = vmatpush1.bf16.msra.mxu0 %v509
    %652 = vmatprep.subr.bf16.mxu0 %v514
    %653 = vmatpush1.bf16.msra.mxu0 %v513
    %654 = vmatprep.subr.bf16.mxu0 %v518
    %655 = vmatpush1.bf16.msra.mxu0 %v517
    %656 = vmatprep.mubr.bf16.mxu0 %v240
    %657 = vmatmul.mubr.bf16.gmra.mrb[0].mxu0 %v239
    %v658 = vpop.f32.mrb[0].mxu0
    %v659 = vadd.f32 %v254, %v658
    %v660 = vpop.f32.mrb[0].mxu0
    %v661 = vadd.f32 %v258, %v660
    %v662 = vpop.f32.mrb[0].mxu0
    %v663 = vpop.f32.mrb[0].mxu0
    %664 = vdwg.mxu0
    %vm665 = vcmp.gt.f32.partialorder %v618, 0.0
    %vm666 = vcmp.gt.f32.partialorder %v620, 0.0
    %vm667 = vcmp.gt.f32.partialorder %v659, 0.0
    %vm668 = vcmp.gt.f32.partialorder %v661, 0.0
    %v669 = vmul.f32 %v618, 0.2
    %v670 = vmul.f32 %v620, 0.2
    %v671 = vmul.f32 %v659, 0.2
    %v672 = vmul.f32 %v661, 0.2
    %v673 = vsel %vm665, %v618, %v669
    %v674 = vsel %vm666, %v620, %v670
    %v675 = vsel %vm667, %v659, %v671
    %v676 = vsel %vm668, %v661, %v672
    %v677 = vld [vmem:[#allocation5] sm:$0xff]
    %v678 = vld [vmem:[#allocation5 + $0x8] sm:$0xff]
    %v679 = vld [vmem:[#allocation5 + $0x10] sm:$0xff]
    %v680 = vld [vmem:[#allocation5 + $0x18] sm:$0xff]
    %v681 = vld [vmem:[#allocation5 + $0x20] sm:$0xff]
    %v682 = vld [vmem:[#allocation5 + $0x28] sm:$0xff]
    %v683 = vld [vmem:[#allocation5 + $0x30] sm:$0xff]
    %v684 = vld [vmem:[#allocation5 + $0x38] sm:$0xff]
    %v685 = vld [vmem:[#allocation5 + $0x40] sm:$0xff]
    %v686 = vld [vmem:[#allocation5 + $0x48] sm:$0xff]
    %v687 = vld [vmem:[#allocation5 + $0x50] sm:$0xff]
    %v688 = vld [vmem:[#allocation5 + $0x58] sm:$0xff]
    %v689 = vld [vmem:[#allocation5 + $0x60] sm:$0xff]
    %v690 = vld [vmem:[#allocation5 + $0x68] sm:$0xff]
    %v691 = vld [vmem:[#allocation5 + $0x70] sm:$0xff]
    %v692 = vld [vmem:[#allocation5 + $0x78] sm:$0xff]
    %v693 = vld [vmem:[#allocation5 + $0x80] sm:$0xff]
    %v694 = vld [vmem:[#allocation5 + $0x88] sm:$0xff]
    %v695 = vld [vmem:[#allocation5 + $0x90] sm:$0xff]
    %v696 = vld [vmem:[#allocation5 + $0x98] sm:$0xff]
    %v697 = vld [vmem:[#allocation5 + $0xa0] sm:$0xff]
    %v698 = vld [vmem:[#allocation5 + $0xa8] sm:$0xff]
    %v699 = vld [vmem:[#allocation5 + $0xb0] sm:$0xff]
    %v700 = vld [vmem:[#allocation5 + $0xb8] sm:$0xff]
    %v701 = vld [vmem:[#allocation5 + $0xc0] sm:$0xff]
    %v702 = vld [vmem:[#allocation5 + $0xc8] sm:$0xff]
    %v703 = vld [vmem:[#allocation5 + $0xd0] sm:$0xff]
    %v704 = vld [vmem:[#allocation5 + $0xd8] sm:$0xff]
    %v705 = vld [vmem:[#allocation5 + $0xe0] sm:$0xff]
    %v706 = vld [vmem:[#allocation5 + $0xe8] sm:$0xff]
    %v707 = vld [vmem:[#allocation5 + $0xf0] sm:$0xff]
    %v708 = vld [vmem:[#allocation5 + $0xf8] sm:$0xff]
    %v709 = vld [vmem:[#allocation5 + $0x100] sm:$0xff]
    %v710 = vld [vmem:[#allocation5 + $0x108] sm:$0xff]
    %v711 = vld [vmem:[#allocation5 + $0x110] sm:$0xff]
    %v712 = vld [vmem:[#allocation5 + $0x118] sm:$0xff]
    %v713 = vld [vmem:[#allocation5 + $0x120] sm:$0xff]
    %v714 = vld [vmem:[#allocation5 + $0x128] sm:$0xff]
    %v715 = vld [vmem:[#allocation5 + $0x130] sm:$0xff]
    %v716 = vld [vmem:[#allocation5 + $0x138] sm:$0xff]
    %v717 = vld [vmem:[#allocation5 + $0x140] sm:$0xff]
    %v718 = vld [vmem:[#allocation5 + $0x148] sm:$0xff]
    %v719 = vld [vmem:[#allocation5 + $0x150] sm:$0xff]
    %v720 = vld [vmem:[#allocation5 + $0x158] sm:$0xff]
    %v721 = vld [vmem:[#allocation5 + $0x160] sm:$0xff]
    %v722 = vld [vmem:[#allocation5 + $0x168] sm:$0xff]
    %v723 = vld [vmem:[#allocation5 + $0x170] sm:$0xff]
    %v724 = vld [vmem:[#allocation5 + $0x178] sm:$0xff]
    %v725 = vld [vmem:[#allocation5 + $0x180] sm:$0xff]
    %v726 = vld [vmem:[#allocation5 + $0x188] sm:$0xff]
    %v727 = vld [vmem:[#allocation5 + $0x190] sm:$0xff]
    %v728 = vld [vmem:[#allocation5 + $0x198] sm:$0xff]
    %v729 = vld [vmem:[#allocation5 + $0x1a0] sm:$0xff]
    %v730 = vld [vmem:[#allocation5 + $0x1a8] sm:$0xff]
    %v731 = vld [vmem:[#allocation5 + $0x1b0] sm:$0xff]
    %v732 = vld [vmem:[#allocation5 + $0x1b8] sm:$0xff]
    %v733 = vld [vmem:[#allocation5 + $0x1c0] sm:$0xff]
    %v734 = vld [vmem:[#allocation5 + $0x1c8] sm:$0xff]
    %v735 = vld [vmem:[#allocation5 + $0x1d0] sm:$0xff]
    %v736 = vld [vmem:[#allocation5 + $0x1d8] sm:$0xff]
    %v737 = vld [vmem:[#allocation5 + $0x1e0] sm:$0xff]
    %v738 = vld [vmem:[#allocation5 + $0x1e8] sm:$0xff]
    %v739 = vld [vmem:[#allocation5 + $0x1f0] sm:$0xff]
    %v740 = vld [vmem:[#allocation5 + $0x1f8] sm:$0xff]
    %v741 = vpack.c.bf16 %v673, %v673
    %v742 = vpack.c.bf16 %v674, %v674
    %v743 = vpack.c.bf16 %v675, %v675
    %v744 = vpack.c.bf16 %v676, %v676
    %v745 = vld [vmem:[%s6] sm:$0x3]
    %v747 = vlaneseq
    %v748 = vshrl.u32 %v747, 7
    %v749 = vsub.s32 0, %v748
    %v750 = vrot.slane %v745, %v749
    %v751 = vlaneseq
    %v752 = vshrl.u32 %v751, 7
    %v753 = vsub.s32 1, %v752
    %v754 = vrot.slane %v745, %v753
    %v821 = vunpack.c.l.b16 %v677
    %v822 = vunpack.c.h.b16 %v677
    %v823 = vunpack.c.l.b16 %v678
    %v824 = vunpack.c.h.b16 %v678
    %v825 = vunpack.c.l.b16 %v679
    %v826 = vunpack.c.h.b16 %v679
    %v827 = vunpack.c.l.b16 %v680
    %v828 = vunpack.c.h.b16 %v680
    %v829 = vunpack.c.l.b16 %v681
    %v830 = vunpack.c.h.b16 %v681
    %v831 = vunpack.c.l.b16 %v682
    %v832 = vunpack.c.h.b16 %v682
    %v833 = vunpack.c.l.b16 %v683
    %v834 = vunpack.c.h.b16 %v683
    %v835 = vunpack.c.l.b16 %v684
    %v836 = vunpack.c.h.b16 %v684
    %v837 = vunpack.c.l.b16 %v685
    %v838 = vunpack.c.h.b16 %v685
    %v839 = vunpack.c.l.b16 %v686
    %v840 = vunpack.c.h.b16 %v686
    %v841 = vunpack.c.l.b16 %v687
    %v842 = vunpack.c.h.b16 %v687
    %v843 = vunpack.c.l.b16 %v688
    %v844 = vunpack.c.h.b16 %v688
    %v845 = vunpack.c.l.b16 %v689
    %v846 = vunpack.c.h.b16 %v689
    %v847 = vunpack.c.l.b16 %v690
    %v848 = vunpack.c.h.b16 %v690
    %v849 = vunpack.c.l.b16 %v691
    %v850 = vunpack.c.h.b16 %v691
    %v851 = vunpack.c.l.b16 %v692
    %v852 = vunpack.c.h.b16 %v692
    %v853 = vunpack.c.l.b16 %v693
    %v854 = vunpack.c.h.b16 %v693
    %v855 = vunpack.c.l.b16 %v694
    %v856 = vunpack.c.h.b16 %v694
    %v857 = vunpack.c.l.b16 %v695
    %v858 = vunpack.c.h.b16 %v695
    %v859 = vunpack.c.l.b16 %v696
    %v860 = vunpack.c.h.b16 %v696
    %v861 = vunpack.c.l.b16 %v697
    %v862 = vunpack.c.h.b16 %v697
    %v863 = vunpack.c.l.b16 %v698
    %v864 = vunpack.c.h.b16 %v698
    %v865 = vunpack.c.l.b16 %v699
    %v866 = vunpack.c.h.b16 %v699
    %v867 = vunpack.c.l.b16 %v700
    %v868 = vunpack.c.h.b16 %v700
    %v869 = vunpack.c.l.b16 %v701
    %v870 = vunpack.c.h.b16 %v701
    %v871 = vunpack.c.l.b16 %v702
    %v872 = vunpack.c.h.b16 %v702
    %v873 = vunpack.c.l.b16 %v703
    %v874 = vunpack.c.h.b16 %v703
    %v875 = vunpack.c.l.b16 %v704
    %v876 = vunpack.c.h.b16 %v704
    %v877 = vunpack.c.l.b16 %v705
    %v878 = vunpack.c.h.b16 %v705
    %v879 = vunpack.c.l.b16 %v706
    %v880 = vunpack.c.h.b16 %v706
    %v881 = vunpack.c.l.b16 %v707
    %v882 = vunpack.c.h.b16 %v707
    %v883 = vunpack.c.l.b16 %v708
    %v884 = vunpack.c.h.b16 %v708
    %v885 = vunpack.c.l.b16 %v709
    %v886 = vunpack.c.h.b16 %v709
    %v887 = vunpack.c.l.b16 %v710
    %v888 = vunpack.c.h.b16 %v710
    %v889 = vunpack.c.l.b16 %v711
    %v890 = vunpack.c.h.b16 %v711
    %v891 = vunpack.c.l.b16 %v712
    %v892 = vunpack.c.h.b16 %v712
    %v893 = vunpack.c.l.b16 %v713
    %v894 = vunpack.c.h.b16 %v713
    %v895 = vunpack.c.l.b16 %v714
    %v896 = vunpack.c.h.b16 %v714
    %v897 = vunpack.c.l.b16 %v715
    %v898 = vunpack.c.h.b16 %v715
    %v899 = vunpack.c.l.b16 %v716
    %v900 = vunpack.c.h.b16 %v716
    %v901 = vunpack.c.l.b16 %v717
    %v902 = vunpack.c.h.b16 %v717
    %v903 = vunpack.c.l.b16 %v718
    %v904 = vunpack.c.h.b16 %v718
    %v905 = vunpack.c.l.b16 %v719
    %v906 = vunpack.c.h.b16 %v719
    %v907 = vunpack.c.l.b16 %v720
    %v908 = vunpack.c.h.b16 %v720
    %v909 = vunpack.c.l.b16 %v721
    %v910 = vunpack.c.h.b16 %v721
    %v911 = vunpack.c.l.b16 %v722
    %v912 = vunpack.c.h.b16 %v722
    %v913 = vunpack.c.l.b16 %v723
    %v914 = vunpack.c.h.b16 %v723
    %v915 = vunpack.c.l.b16 %v724
    %v916 = vunpack.c.h.b16 %v724
    %v917 = vunpack.c.l.b16 %v725
    %v918 = vunpack.c.h.b16 %v725
    %v919 = vunpack.c.l.b16 %v726
    %v920 = vunpack.c.h.b16 %v726
    %v921 = vunpack.c.l.b16 %v727
    %v922 = vunpack.c.h.b16 %v727
    %v923 = vunpack.c.l.b16 %v728
    %v924 = vunpack.c.h.b16 %v728
    %v925 = vunpack.c.l.b16 %v729
    %v926 = vunpack.c.h.b16 %v729
    %v927 = vunpack.c.l.b16 %v730
    %v928 = vunpack.c.h.b16 %v730
    %v929 = vunpack.c.l.b16 %v731
    %v930 = vunpack.c.h.b16 %v731
    %v931 = vunpack.c.l.b16 %v732
    %v932 = vunpack.c.h.b16 %v732
    %v933 = vunpack.c.l.b16 %v733
    %v934 = vunpack.c.h.b16 %v733
    %v935 = vunpack.c.l.b16 %v734
    %v936 = vunpack.c.h.b16 %v734
    %v937 = vunpack.c.l.b16 %v735
    %v938 = vunpack.c.h.b16 %v735
    %v939 = vunpack.c.l.b16 %v736
    %v940 = vunpack.c.h.b16 %v736
    %v941 = vunpack.c.l.b16 %v737
    %v942 = vunpack.c.h.b16 %v737
    %v943 = vunpack.c.l.b16 %v738
    %v944 = vunpack.c.h.b16 %v738
    %v945 = vunpack.c.l.b16 %v739
    %v946 = vunpack.c.h.b16 %v739
    %v947 = vunpack.c.l.b16 %v740
    %v948 = vunpack.c.h.b16 %v740
    %v949 = vpack.c.b16 %v823, %v821
    %v950 = vpack.c.b16 %v824, %v822
    %v951 = vpack.c.b16 %v827, %v825
    %v952 = vpack.c.b16 %v828, %v826
    %v953 = vpack.c.b16 %v831, %v829
    %v954 = vpack.c.b16 %v832, %v830
    %v955 = vpack.c.b16 %v835, %v833
    %v956 = vpack.c.b16 %v836, %v834
    %v957 = vpack.c.b16 %v839, %v837
    %v958 = vpack.c.b16 %v840, %v838
    %v959 = vpack.c.b16 %v843, %v841
    %v960 = vpack.c.b16 %v844, %v842
    %v961 = vpack.c.b16 %v847, %v845
    %v962 = vpack.c.b16 %v848, %v846
    %v963 = vpack.c.b16 %v851, %v849
    %v964 = vpack.c.b16 %v852, %v850
    %v965 = vpack.c.b16 %v855, %v853
    %v966 = vpack.c.b16 %v856, %v854
    %v967 = vpack.c.b16 %v859, %v857
    %v968 = vpack.c.b16 %v860, %v858
    %v969 = vpack.c.b16 %v863, %v861
    %v970 = vpack.c.b16 %v864, %v862
    %v971 = vpack.c.b16 %v867, %v865
    %v972 = vpack.c.b16 %v868, %v866
    %v973 = vpack.c.b16 %v871, %v869
    %v974 = vpack.c.b16 %v872, %v870
    %v975 = vpack.c.b16 %v875, %v873
    %v976 = vpack.c.b16 %v876, %v874
    %v977 = vpack.c.b16 %v879, %v877
    %v978 = vpack.c.b16 %v880, %v878
    %v979 = vpack.c.b16 %v883, %v881
    %v980 = vpack.c.b16 %v884, %v882
    %v981 = vpack.c.b16 %v887, %v885
    %v982 = vpack.c.b16 %v888, %v886
    %v983 = vpack.c.b16 %v891, %v889
    %v984 = vpack.c.b16 %v892, %v890
    %v985 = vpack.c.b16 %v895, %v893
    %v986 = vpack.c.b16 %v896, %v894
    %v987 = vpack.c.b16 %v899, %v897
    %v988 = vpack.c.b16 %v900, %v898
    %v989 = vpack.c.b16 %v903, %v901
    %v990 = vpack.c.b16 %v904, %v902
    %v991 = vpack.c.b16 %v907, %v905
    %v992 = vpack.c.b16 %v908, %v906
    %v993 = vpack.c.b16 %v911, %v909
    %v994 = vpack.c.b16 %v912, %v910
    %v995 = vpack.c.b16 %v915, %v913
    %v996 = vpack.c.b16 %v916, %v914
    %v997 = vpack.c.b16 %v919, %v917
    %v998 = vpack.c.b16 %v920, %v918
    %v999 = vpack.c.b16 %v923, %v921
    %v1000 = vpack.c.b16 %v924, %v922
    %v1001 = vpack.c.b16 %v927, %v925
    %v1002 = vpack.c.b16 %v928, %v926
    %v1003 = vpack.c.b16 %v931, %v929
    %v1004 = vpack.c.b16 %v932, %v930
    %v1005 = vpack.c.b16 %v935, %v933
    %v1006 = vpack.c.b16 %v936, %v934
    %v1007 = vpack.c.b16 %v939, %v937
    %v1008 = vpack.c.b16 %v940, %v938
    %v1009 = vpack.c.b16 %v943, %v941
    %v1010 = vpack.c.b16 %v944, %v942
    %v1011 = vpack.c.b16 %v947, %v945
    %v1012 = vpack.c.b16 %v948, %v946
    %1077 = vmatprep.subr.bf16.mxu0 %v950
    %1078 = vmatpush1.bf16.msra.mxu0 %v949
    %1079 = vmatprep.subr.bf16.mxu0 %v952
    %1080 = vmatpush1.bf16.msra.mxu0 %v951
    %1081 = vmatprep.subr.bf16.mxu0 %v954
    %1082 = vmatpush1.bf16.msra.mxu0 %v953
    %1083 = vmatprep.subr.bf16.mxu0 %v956
    %1084 = vmatpush1.bf16.msra.mxu0 %v955
    %1085 = vmatprep.subr.bf16.mxu0 %v958
    %1086 = vmatpush1.bf16.msra.mxu0 %v957
    %1087 = vmatprep.subr.bf16.mxu0 %v960
    %1088 = vmatpush1.bf16.msra.mxu0 %v959
    %1089 = vmatprep.subr.bf16.mxu0 %v962
    %1090 = vmatpush1.bf16.msra.mxu0 %v961
    %1091 = vmatprep.subr.bf16.mxu0 %v964
    %1092 = vmatpush1.bf16.msra.mxu0 %v963
    %1093 = vmatprep.subr.bf16.mxu0 %v966
    %1094 = vmatpush1.bf16.msra.mxu0 %v965
    %1095 = vmatprep.subr.bf16.mxu0 %v968
    %1096 = vmatpush1.bf16.msra.mxu0 %v967
    %1097 = vmatprep.subr.bf16.mxu0 %v970
    %1098 = vmatpush1.bf16.msra.mxu0 %v969
    %1099 = vmatprep.subr.bf16.mxu0 %v972
    %1100 = vmatpush1.bf16.msra.mxu0 %v971
    %1101 = vmatprep.subr.bf16.mxu0 %v974
    %1102 = vmatpush1.bf16.msra.mxu0 %v973
    %1103 = vmatprep.subr.bf16.mxu0 %v976
    %1104 = vmatpush1.bf16.msra.mxu0 %v975
    %1105 = vmatprep.subr.bf16.mxu0 %v978
    %1106 = vmatpush1.bf16.msra.mxu0 %v977
    %1107 = vmatprep.subr.bf16.mxu0 %v980
    %1108 = vmatpush1.bf16.msra.mxu0 %v979
    %1109 = vmatprep.mubr.bf16.mxu0 %v742
    %1110 = vmatmul.mubr.bf16.gmra.mrb[0].mxu0 %v741
    %v1111 = vpop.f32.mrb[0].mxu0
    %v1112 = vadd.f32 %v750, %v1111
    %v1113 = vpop.f32.mrb[0].mxu0
    %v1114 = vadd.f32 %v754, %v1113
    %v1115 = vpop.f32.mrb[0].mxu0
    %v1116 = vpop.f32.mrb[0].mxu0
    %1117 = vdwg.mxu0
    %1118 = vmatprep.subr.bf16.mxu0 %v982
    %1119 = vmatpush1.bf16.msra.mxu0 %v981
    %1120 = vmatprep.subr.bf16.mxu0 %v984
    %1121 = vmatpush1.bf16.msra.mxu0 %v983
    %1122 = vmatprep.subr.bf16.mxu0 %v986
    %1123 = vmatpush1.bf16.msra.mxu0 %v985
    %1124 = vmatprep.subr.bf16.mxu0 %v988
    %1125 = vmatpush1.bf16.msra.mxu0 %v987
    %1126 = vmatprep.subr.bf16.mxu0 %v990
    %1127 = vmatpush1.bf16.msra.mxu0 %v989
    %1128 = vmatprep.subr.bf16.mxu0 %v992
    %1129 = vmatpush1.bf16.msra.mxu0 %v991
    %1130 = vmatprep.subr.bf16.mxu0 %v994
    %1131 = vmatpush1.bf16.msra.mxu0 %v993
    %1132 = vmatprep.subr.bf16.mxu0 %v996
    %1133 = vmatpush1.bf16.msra.mxu0 %v995
    %1134 = vmatprep.subr.bf16.mxu0 %v998
    %1135 = vmatpush1.bf16.msra.mxu0 %v997
    %1136 = vmatprep.subr.bf16.mxu0 %v1000
    %1137 = vmatpush1.bf16.msra.mxu0 %v999
    %1138 = vmatprep.subr.bf16.mxu0 %v1002
    %1139 = vmatpush1.bf16.msra.mxu0 %v1001
    %1140 = vmatprep.subr.bf16.mxu0 %v1004
    %1141 = vmatpush1.bf16.msra.mxu0 %v1003
    %1142 = vmatprep.subr.bf16.mxu0 %v1006
    %1143 = vmatpush1.bf16.msra.mxu0 %v1005
    %1144 = vmatprep.subr.bf16.mxu0 %v1008
    %1145 = vmatpush1.bf16.msra.mxu0 %v1007
    %1146 = vmatprep.subr.bf16.mxu0 %v1010
    %1147 = vmatpush1.bf16.msra.mxu0 %v1009
    %1148 = vmatprep.subr.bf16.mxu0 %v1012
    %1149 = vmatpush1.bf16.msra.mxu0 %v1011
    %1150 = vmatprep.mubr.bf16.mxu0 %v744
    %1151 = vmatmul.mubr.bf16.gmra.mrb[0].mxu0 %v743
    %v1152 = vpop.f32.mrb[0].mxu0
    %v1153 = vadd.f32 %v1112, %v1152
    %v1154 = vpop.f32.mrb[0].mxu0
    %v1155 = vadd.f32 %v1114, %v1154
    %v1156 = vpop.f32.mrb[0].mxu0
    %v1157 = vpop.f32.mrb[0].mxu0
    %1158 = vdwg.mxu0
    %vm1159 = vcmp.gt.f32.partialorder %v1153, 0.0
    %vm1160 = vcmp.gt.f32.partialorder %v1155, 0.0
    %v1161 = vmul.f32 %v1153, 0.2
    %v1162 = vmul.f32 %v1155, 0.2
    %v1163 = vsel %vm1159, %v1153, %v1161
    %v1164 = vsel %vm1160, %v1155, %v1162
    %v1165 = vld [vmem:[%s7] sm:$0xf]
    %v1166 = vld [vmem:[%s7 + $0x4] sm:$0xf]
    %v1167 = vld [vmem:[%s7 + $0x8] sm:$0xf]
    %v1168 = vld [vmem:[%s7 + $0xc] sm:$0xf]
    %v1169 = vld [vmem:[%s7 + $0x10] sm:$0xf]
    %v1170 = vld [vmem:[%s7 + $0x14] sm:$0xf]
    %v1171 = vld [vmem:[%s7 + $0x18] sm:$0xf]
    %v1172 = vld [vmem:[%s7 + $0x1c] sm:$0xf]
    %v1173 = vld [vmem:[%s7 + $0x20] sm:$0xf]
    %v1174 = vld [vmem:[%s7 + $0x24] sm:$0xf]
    %v1175 = vld [vmem:[%s7 + $0x28] sm:$0xf]
    %v1176 = vld [vmem:[%s7 + $0x2c] sm:$0xf]
    %v1177 = vld [vmem:[%s7 + $0x30] sm:$0xf]
    %v1178 = vld [vmem:[%s7 + $0x34] sm:$0xf]
    %v1179 = vld [vmem:[%s7 + $0x38] sm:$0xf]
    %v1180 = vld [vmem:[%s7 + $0x3c] sm:$0xf]
    %v1181 = vld [vmem:[%s7 + $0x40] sm:$0xf]
    %v1182 = vld [vmem:[%s7 + $0x44] sm:$0xf]
    %v1183 = vld [vmem:[%s7 + $0x48] sm:$0xf]
    %v1184 = vld [vmem:[%s7 + $0x4c] sm:$0xf]
    %v1185 = vld [vmem:[%s7 + $0x50] sm:$0xf]
    %v1186 = vld [vmem:[%s7 + $0x54] sm:$0xf]
    %v1187 = vld [vmem:[%s7 + $0x58] sm:$0xf]
    %v1188 = vld [vmem:[%s7 + $0x5c] sm:$0xf]
    %v1189 = vld [vmem:[%s7 + $0x60] sm:$0xf]
    %v1190 = vld [vmem:[%s7 + $0x64] sm:$0xf]
    %v1191 = vld [vmem:[%s7 + $0x68] sm:$0xf]
    %v1192 = vld [vmem:[%s7 + $0x6c] sm:$0xf]
    %v1193 = vld [vmem:[%s7 + $0x70] sm:$0xf]
    %v1194 = vld [vmem:[%s7 + $0x74] sm:$0xf]
    %v1195 = vld [vmem:[%s7 + $0x78] sm:$0xf]
    %v1196 = vld [vmem:[%s7 + $0x7c] sm:$0xf]
    %v1197 = vpack.c.bf16 %v1163, %v1163
    %v1198 = vpack.c.bf16 %v1164, %v1164
    %v1199 = vld [vmem:[%s8] sm:$0x1]
    %v1201 = vlaneseq
    %v1202 = vshrl.u32 %v1201, 7
    %v1203 = vsub.s32 0, %v1202
    %v1204 = vrot.slane %v1199, %v1203
    %v1238 = vunpack.c.l.b16 %v1165
    %v1239 = vunpack.c.l.b16 %v1166
    %v1240 = vunpack.c.l.b16 %v1167
    %v1241 = vunpack.c.l.b16 %v1168
    %v1242 = vunpack.c.l.b16 %v1169
    %v1243 = vunpack.c.l.b16 %v1170
    %v1244 = vunpack.c.l.b16 %v1171
    %v1245 = vunpack.c.l.b16 %v1172
    %v1246 = vunpack.c.l.b16 %v1173
    %v1247 = vunpack.c.l.b16 %v1174
    %v1248 = vunpack.c.l.b16 %v1175
    %v1249 = vunpack.c.l.b16 %v1176
    %v1250 = vunpack.c.l.b16 %v1177
    %v1251 = vunpack.c.l.b16 %v1178
    %v1252 = vunpack.c.l.b16 %v1179
    %v1253 = vunpack.c.l.b16 %v1180
    %v1254 = vunpack.c.l.b16 %v1181
    %v1255 = vunpack.c.l.b16 %v1182
    %v1256 = vunpack.c.l.b16 %v1183
    %v1257 = vunpack.c.l.b16 %v1184
    %v1258 = vunpack.c.l.b16 %v1185
    %v1259 = vunpack.c.l.b16 %v1186
    %v1260 = vunpack.c.l.b16 %v1187
    %v1261 = vunpack.c.l.b16 %v1188
    %v1262 = vunpack.c.l.b16 %v1189
    %v1263 = vunpack.c.l.b16 %v1190
    %v1264 = vunpack.c.l.b16 %v1191
    %v1265 = vunpack.c.l.b16 %v1192
    %v1266 = vunpack.c.l.b16 %v1193
    %v1267 = vunpack.c.l.b16 %v1194
    %v1268 = vunpack.c.l.b16 %v1195
    %v1269 = vunpack.c.l.b16 %v1196
    %v1270 = vpack.c.b16 %v1239, %v1238
    %v1271 = vpack.c.b16 %v1241, %v1240
    %v1272 = vpack.c.b16 %v1243, %v1242
    %v1273 = vpack.c.b16 %v1245, %v1244
    %v1274 = vpack.c.b16 %v1247, %v1246
    %v1275 = vpack.c.b16 %v1249, %v1248
    %v1276 = vpack.c.b16 %v1251, %v1250
    %v1277 = vpack.c.b16 %v1253, %v1252
    %v1278 = vpack.c.b16 %v1255, %v1254
    %v1279 = vpack.c.b16 %v1257, %v1256
    %v1280 = vpack.c.b16 %v1259, %v1258
    %v1281 = vpack.c.b16 %v1261, %v1260
    %v1282 = vpack.c.b16 %v1263, %v1262
    %v1283 = vpack.c.b16 %v1265, %v1264
    %v1284 = vpack.c.b16 %v1267, %v1266
    %v1285 = vpack.c.b16 %v1269, %v1268
    %1302 = vmatprep.subr.bf16.mxu0 0
    %1303 = vmatpush1.bf16.msra.mxu0 %v1270
    %1304 = vmatprep.subr.bf16.mxu0 0
    %1305 = vmatpush1.bf16.msra.mxu0 %v1271
    %1306 = vmatprep.subr.bf16.mxu0 0
    %1307 = vmatpush1.bf16.msra.mxu0 %v1272
    %1308 = vmatprep.subr.bf16.mxu0 0
    %1309 = vmatpush1.bf16.msra.mxu0 %v1273
    %1310 = vmatprep.subr.bf16.mxu0 0
    %1311 = vmatpush1.bf16.msra.mxu0 %v1274
    %1312 = vmatprep.subr.bf16.mxu0 0
    %1313 = vmatpush1.bf16.msra.mxu0 %v1275
    %1314 = vmatprep.subr.bf16.mxu0 0
    %1315 = vmatpush1.bf16.msra.mxu0 %v1276
    %1316 = vmatprep.subr.bf16.mxu0 0
    %1317 = vmatpush1.bf16.msra.mxu0 %v1277
    %1318 = vmatprep.subr.bf16.mxu0 0
    %1319 = vmatpush1.bf16.msra.mxu0 %v1278
    %1320 = vmatprep.subr.bf16.mxu0 0
    %1321 = vmatpush1.bf16.msra.mxu0 %v1279
    %1322 = vmatprep.subr.bf16.mxu0 0
    %1323 = vmatpush1.bf16.msra.mxu0 %v1280
    %1324 = vmatprep.subr.bf16.mxu0 0
    %1325 = vmatpush1.bf16.msra.mxu0 %v1281
    %1326 = vmatprep.subr.bf16.mxu0 0
    %1327 = vmatpush1.bf16.msra.mxu0 %v1282
    %1328 = vmatprep.subr.bf16.mxu0 0
    %1329 = vmatpush1.bf16.msra.mxu0 %v1283
    %1330 = vmatprep.subr.bf16.mxu0 0
    %1331 = vmatpush1.bf16.msra.mxu0 %v1284
    %1332 = vmatprep.subr.bf16.mxu0 0
    %1333 = vmatpush1.bf16.msra.mxu0 %v1285
    %1334 = vmatprep.mubr.bf16.mxu0 %v1198
    %1335 = vmatmul.mubr.bf16.gmra.mrb[0].mxu0 %v1197
    %v1336 = vpop.f32.mrb[0].mxu0
    %v1337 = vadd.f32 %v1204, %v1336
    %v1338 = vpop.f32.mrb[0].mxu0
    %v1339 = vpop.f32.mrb[0].mxu0
    %v1340 = vpop.f32.mrb[0].mxu0
    %1341 = vdwg.mxu0
    %v1342 = vtanh.pop %v1337
    %vm1343 = vcmask 261120
    %1344 = vst.msk [vmem:[#allocation7] sm:$0xff] %vm1343, %v1342
    // Predicated region
    $region46: #{generator_forward.1} parent=1 // pred_check
      _
    $region47: #{generator_forward.1} parent=1 // pred_check_branch
      %1346 = sbr.rel (0) target = $region49
    $region48: #{generator_forward.1} parent=1 // pred_region
      %s1348 = ssub.s32 128, 128
      %1349 = vsyncadd [#allocation4], %s1348
      %s1351 = sshll.u32 [#allocation7], 4
      %s1352 = int_to_ptr.vmem [resolvable:$true] %s1351
      %1354 = dma.vmem_to_hbm [thread:$0]  %s1352, 128, %s9, [#allocation4]
    $region49: #{generator_forward.1} parent=1 // pred_fallthru
      _
    // Predicated region
    $region50: #{generator_forward.1} parent=1 // pred_check
      _
    $region51: #{generator_forward.1} parent=1 // pred_check_branch
      %1356 = sbr.rel (0) target = $region53
    $region52: #{generator_forward.1} parent=1 // pred_region
      %1357 = dma.done [#allocation4], 128
    $region53: #{generator_forward.1} parent=1 // pred_fallthru
      _
    %1358 = vsyncpa [#allocation3], 1
    %1359 = vsyncpa [#allocation6], 1
    %1360 = vsyncpa [#allocation4], 1

</llo_original>
